<compile_context>
chip_gen: v6e
topology: v6e:2x2x1
jax: 0.10.0
libtpu: 0.0.40
codegen_flags: <defaults>
</compile_context>

<pallas_src>
import jax
import jax.numpy as jnp
from jax.experimental import pallas as pl
from jax.experimental.pallas import tpu as pltpu


def _round_up(x, m):
    return ((x + m - 1) // m) * m


def _vmem_capacity_bytes():
    """Physical-VMEM capability probe (never masks kernel/lowering errors)."""
    try:
        cap = int(getattr(pltpu.get_tpu_info(), "vmem_capacity_bytes", 0))
        if cap > 0:
            return cap
    except Exception:
        pass
    return 64 * 1024 * 1024  # v7x per-TC physical VMEM: the most restrictive chip


def _fc_kernel_single(x_ref, w1_ref, b1_ref, w2_ref, b2_ref, o_ref):
    # Whole hidden dim in one step: no accumulator needed.
    x = x_ref[...].astype(w1_ref.dtype)                      # cast in-kernel (VPU)
    h = jnp.dot(x, w1_ref[...], preferred_element_type=jnp.float32)
    h = jnp.maximum(h + b1_ref[...], 0.0)                    # bias + ReLU
    o = jnp.dot(h.astype(w2_ref.dtype), w2_ref[...],
                preferred_element_type=jnp.float32)
    o_ref[...] = (o + b2_ref[...]).astype(o_ref.dtype)


def _fc_kernel_htiled(x_ref, w1_ref, b1_ref, w2_ref, b2_ref, o_ref, acc_ref):
    # Hidden dim tiled:  y = sum_h relu(x @ W1[:, h] + b1[h]) @ W2[h, :]  (exact,
    # since ReLU is elementwise in the hidden dimension).
    h_idx = pl.program_id(1)

    @pl.when(h_idx == 0)
    def _():
        acc_ref[...] = jnp.zeros_like(acc_ref)

    x = x_ref[...].astype(w1_ref.dtype)
    h = jnp.dot(x, w1_ref[...], preferred_element_type=jnp.float32)
    h = jnp.maximum(h + b1_ref[...], 0.0)
    acc_ref[...] += jnp.dot(h.astype(w2_ref.dtype), w2_ref[...],
                            preferred_element_type=jnp.float32)

    @pl.when(h_idx == pl.num_programs(1) - 1)
    def _():
        o_ref[...] = (acc_ref[...] + b2_ref[...]).astype(o_ref.dtype)


def eegnet_fc(x, w1_t, b1, w2_t, b2, *, compute_dtype=jnp.bfloat16,
              out_dtype=None):
    """fc head of EEGNet_feature_wo_BN.

    x: (B, D) activations (any float dtype; cast to `compute_dtype` in-kernel).
    w1_t, w2_t: (D, D) weights pre-transposed to (in, out).
    b1, b2: (D,) biases.  Returns (B, D) in `out_dtype` (default: x.dtype).
    """
    B, D = x.shape
    out_dtype = x.dtype if out_dtype is None else jnp.dtype(out_dtype)
    cd_size = jnp.dtype(compute_dtype).itemsize
    x_size = jnp.dtype(x.dtype).itemsize
    out_size = jnp.dtype(out_dtype).itemsize

    vmem_budget = _vmem_capacity_bytes() * 7 // 8    # headroom for compiler scratch

    # ---- Hidden-dim tiling: keep (double-buffered) resident weight blocks under
    # ~1/3 of the VMEM budget.  Only tile when D is a clean multiple of 128
    # (lane width); full-dim blocks are otherwise exempt from the (8,128) rule.
    th = D
    if D % 128 == 0 and 2 * (2 * D * D * cd_size) > vmem_budget // 3:
        n128 = D // 128
        th = 128
        for k in range(n128, 0, -1):               # largest divisor tile that fits
            if n128 % k != 0:
                continue
            cand = 128 * k
            if 2 * (2 * D * cand * cd_size) <= vmem_budget // 3:
                th = cand
                break
    grid_h = D // th if th < D else 1

    # ---- Batch tiling: one tile if it fits (per-step overhead dominates at
    # small D); otherwise an even number of tiles so v7x's 2 TCs balance.
    weight_resident = 2 * (2 * D * th * cd_size + (th + D) * 4)
    row_bytes = (2 * D * x_size                      # x tile (double-buffered)
                 + 2 * D * out_size                  # out tile (double-buffered)
                 + (D * 4 if grid_h > 1 else 0)      # f32 accumulator scratch
                 + (D + th) * 4 + D * cd_size)       # in-kernel temporaries
    act_budget = max(vmem_budget - weight_resident, vmem_budget // 4)
    tile_cap = max(8, (act_budget // row_bytes) // 8 * 8)

    if tile_cap >= B:
        grid_b, tile_rows, b_padded = 1, B, B        # full-dim block, no padding
    else:
        grid_b = int(pl.cdiv(B, tile_cap))
        grid_b = _round_up(grid_b, 2)                # even step count for v7x TCs
        tile_rows = _round_up(int(pl.cdiv(B, grid_b)), 8)
        b_padded = grid_b * tile_rows

    xin = x
    if b_padded != B:
        # Only hit when B alone exceeds the VMEM budget; keeps writeback
        # semantics exact regardless of partial-block masking on this JAX rev.
        xin = jnp.pad(x, ((0, b_padded - B), (0, 0)))

    w1c = w1_t.astype(compute_dtype)   # params: cast once (tiny vs. activations)
    w2c = w2_t.astype(compute_dtype)
    b1_2d = b1.astype(jnp.float32).reshape(1, D)
    b2_2d = b2.astype(jnp.float32).reshape(1, D)

    vmem_est = weight_resident + tile_rows * row_bytes
    vmem_limit = int(min(vmem_budget, max(vmem_est * 3 // 2, 16 * 1024 * 1024)))

    cost = pl.CostEstimate(
        flops=4 * b_padded * D * D,                  # two (B,D)x(D,D) matmuls
        transcendentals=0,
        bytes_accessed=(b_padded * D * (x_size + out_size)
                        + grid_b * 2 * D * D * cd_size + 2 * D * 4),
    )

    if grid_h == 1:
        grid = (grid_b,)
        in_specs = [
            pl.BlockSpec((tile_rows, D), lambda i: (i, 0)),    # x tile (orig dtype)
            pl.BlockSpec((D, D), lambda i: (0, 0)),            # W1 (in, out)
            pl.BlockSpec((1, D), lambda i: (0, 0)),            # b1
            pl.BlockSpec((D, D), lambda i: (0, 0)),            # W2 (in, out)
            pl.BlockSpec((1, D), lambda i: (0, 0)),            # b2
        ]
        out_spec = pl.BlockSpec((tile_rows, D), lambda i: (i, 0))
        scratch = []
        kernel = _fc_kernel_single
        dims = ("parallel",)
    else:
        grid = (grid_b, grid_h)
        in_specs = [
            pl.BlockSpec((tile_rows, D), lambda i, h: (i, 0)),  # x tile (resident over h)
            pl.BlockSpec((D, th), lambda i, h: (0, h)),         # W1 column tile
            pl.BlockSpec((1, th), lambda i, h: (0, h)),         # b1 tile
            pl.BlockSpec((th, D), lambda i, h: (h, 0)),         # W2 row tile
            pl.BlockSpec((1, D), lambda i, h: (0, 0)),          # b2
        ]
        out_spec = pl.BlockSpec((tile_rows, D), lambda i, h: (i, 0))
        scratch = [pltpu.VMEM((tile_rows, D), jnp.float32)]
        kernel = _fc_kernel_htiled
        dims = ("parallel", "arbitrary")

    out = pl.pallas_call(
        kernel,
        out_shape=jax.ShapeDtypeStruct((b_padded, D), out_dtype),
        grid_spec=pltpu.PrefetchScalarGridSpec(
            num_scalar_prefetch=0,
            grid=grid,
            in_specs=in_specs,
            out_specs=out_spec,
            scratch_shapes=scratch,
        ),
        compiler_params=pltpu.CompilerParams(
            dimension_semantics=dims,
            vmem_limit_bytes=vmem_limit,
        ),
        cost_estimate=cost,
    )(xin, w1c, b1_2d, w2c, b2_2d)

    return out[:B] if b_padded != B else out


def _init_linear(key, n_dim):
    """Deterministic PyTorch-style init: U(-1/sqrt(fan_in), 1/sqrt(fan_in))."""
    kw, kb = jax.random.split(key)
    bound = 1.0 / jnp.sqrt(jnp.float32(n_dim))
    w = jax.random.uniform(kw, (n_dim, n_dim), jnp.float32, -bound, bound)  # (out, in)
    b = jax.random.uniform(kb, (n_dim,), jnp.float32, -bound, bound)
    return w, b


if __name__ == "__main__":
    key = jax.random.PRNGKey(0)
    k_x, k_l1, k_l2 = jax.random.split(key, 3)

    B, D = 64, 128          # small: single batch tile, single hidden tile
    x = jax.random.normal(k_x, (B, D), jnp.float32)
    w1, b1 = _init_linear(k_l1, D)     # PyTorch Linear layout (out, in)
    w2, b2 = _init_linear(k_l2, D)

    out = eegnet_fc(x, w1.T, b1, w2.T, b2, compute_dtype=jnp.bfloat16)
    out = jax.block_until_ready(out)

    # Reference with matching bf16-operand / f32-accumulation semantics.
    cd = jnp.bfloat16
    h_ref = jnp.maximum(
        jnp.dot(x.astype(cd), w1.T.astype(cd),
                preferred_element_type=jnp.float32) + b1, 0.0)
    ref = jnp.dot(h_ref.astype(cd), w2.T.astype(cd),
                  preferred_element_type=jnp.float32) + b2

    assert out.shape == (B, D)
    assert out.dtype == x.dtype
    assert jnp.allclose(out.astype(jnp.float32), ref, atol=2e-2, rtol=2e-2), \
        float(jnp.max(jnp.abs(out.astype(jnp.float32) - ref)))

    print("KERNEL_OK")
</pallas_src>

<mosaic_0001>
module attributes {stable_mosaic.version = 11 : i64} {
  func.func @_fc_kernel_single(%arg0: i32, %arg1: memref<64x128xf32, #tpu.memory_space<vmem>>, %arg2: memref<128x128xbf16, #tpu.memory_space<vmem>>, %arg3: memref<1x128xf32, #tpu.memory_space<vmem>>, %arg4: memref<128x128xbf16, #tpu.memory_space<vmem>>, %arg5: memref<1x128xf32, #tpu.memory_space<vmem>>, %arg6: memref<64x128xf32, #tpu.memory_space<vmem>>) attributes {dimension_semantics = [#tpu.dimension_semantics<parallel>], iteration_bounds = array<i64: 1>, scalar_prefetch = 0 : i64, scratch_operands = 0 : i64, tpu.core_type = #tpu.core_type<tc>, window_params = [{transform_indices = @transform_0, window_bounds = array<i64: 64, 128>}, {pipeline_mode = #tpu.pipeline_mode<synchronous>, transform_indices = @transform_1, window_bounds = array<i64: 128, 128>}, {pipeline_mode = #tpu.pipeline_mode<synchronous>, transform_indices = @transform_2, window_bounds = array<i64: 1, 128>}, {pipeline_mode = #tpu.pipeline_mode<synchronous>, transform_indices = @transform_3, window_bounds = array<i64: 128, 128>}, {pipeline_mode = #tpu.pipeline_mode<synchronous>, transform_indices = @transform_4, window_bounds = array<i64: 1, 128>}, {transform_indices = @transform_5, window_bounds = array<i64: 64, 128>}]} {
    %c0 = arith.constant 0 : index
    %c0_0 = arith.constant 0 : index
    %0 = vector.load %arg1[%c0, %c0_0] : memref<64x128xf32, #tpu.memory_space<vmem>>, vector<64x128xf32>
    %1 = arith.truncf %0 : vector<64x128xf32> to vector<64x128xbf16>
    %c0_1 = arith.constant 0 : index
    %c0_2 = arith.constant 0 : index
    %2 = vector.load %arg2[%c0_1, %c0_2] : memref<128x128xbf16, #tpu.memory_space<vmem>>, vector<128x128xbf16>
    %cst = arith.constant dense<0.000000e+00> : vector<64x128xf32>
    %3 = tpu.matmul %1, %2, %cst {dimension_numbers = #tpu.dot_dimension_numbers<[1], [0], [0], [1], [0, 0, 1, 1], [], []>} : vector<64x128xbf16>, vector<128x128xbf16>, vector<64x128xf32> -> vector<64x128xf32>
    %c0_3 = arith.constant 0 : index
    %c0_4 = arith.constant 0 : index
    %4 = vector.load %arg3[%c0_3, %c0_4] : memref<1x128xf32, #tpu.memory_space<vmem>>, vector<1x128xf32>
    %5 = vector.broadcast %4 : vector<1x128xf32> to vector<64x128xf32>
    %6 = arith.addf %3, %5 : vector<64x128xf32>
    %cst_5 = arith.constant 0.000000e+00 : f32
    %7 = vector.broadcast %cst_5 : f32 to vector<64x128xf32>
    %8 = arith.maximumf %6, %7 : vector<64x128xf32>
    %9 = arith.truncf %8 : vector<64x128xf32> to vector<64x128xbf16>
    %c0_6 = arith.constant 0 : index
    %c0_7 = arith.constant 0 : index
    %10 = vector.load %arg4[%c0_6, %c0_7] : memref<128x128xbf16, #tpu.memory_space<vmem>>, vector<128x128xbf16>
    %cst_8 = arith.constant dense<0.000000e+00> : vector<64x128xf32>
    %11 = tpu.matmul %9, %10, %cst_8 {dimension_numbers = #tpu.dot_dimension_numbers<[1], [0], [0], [1], [0, 0, 1, 1], [], []>} : vector<64x128xbf16>, vector<128x128xbf16>, vector<64x128xf32> -> vector<64x128xf32>
    %c0_9 = arith.constant 0 : index
    %c0_10 = arith.constant 0 : index
    %12 = vector.load %arg5[%c0_9, %c0_10] : memref<1x128xf32, #tpu.memory_space<vmem>>, vector<1x128xf32>
    %13 = vector.broadcast %12 : vector<1x128xf32> to vector<64x128xf32>
    %14 = arith.addf %11, %13 : vector<64x128xf32>
    %c0_11 = arith.constant 0 : index
    %c0_12 = arith.constant 0 : index
    %15 = vector.load %arg6[%c0_11, %c0_12] : memref<64x128xf32, #tpu.memory_space<vmem>>, vector<64x128xf32>
    tpu.vector_store %arg6[%c0_11, %c0_12], %14 {strides = array<i32>} : memref<64x128xf32, #tpu.memory_space<vmem>>, vector<64x128xf32>,
    return
  }
  func.func @transform_0(%arg0: i32) -> (i32, i32) {
    %c0_i32 = arith.constant 0 : i32
    %c0_i32_0 = arith.constant 0 : i32
    return %arg0, %c0_i32 : i32, i32
  }
  func.func @transform_1(%arg0: i32) -> (i32, i32) {
    %c0_i32 = arith.constant 0 : i32
    %c0_i32_0 = arith.constant 0 : i32
    %c0_i32_1 = arith.constant 0 : i32
    return %c0_i32, %c0_i32_0 : i32, i32
  }
  func.func @transform_2(%arg0: i32) -> (i32, i32) {
    %c0_i32 = arith.constant 0 : i32
    %c0_i32_0 = arith.constant 0 : i32
    %c0_i32_1 = arith.constant 0 : i32
    return %c0_i32, %c0_i32_0 : i32, i32
  }
  func.func @transform_3(%arg0: i32) -> (i32, i32) {
    %c0_i32 = arith.constant 0 : i32
    %c0_i32_0 = arith.constant 0 : i32
    %c0_i32_1 = arith.constant 0 : i32
    return %c0_i32, %c0_i32_0 : i32, i32
  }
  func.func @transform_4(%arg0: i32) -> (i32, i32) {
    %c0_i32 = arith.constant 0 : i32
    %c0_i32_0 = arith.constant 0 : i32
    %c0_i32_1 = arith.constant 0 : i32
    return %c0_i32, %c0_i32_0 : i32, i32
  }
  func.func @transform_5(%arg0: i32) -> (i32, i32) {
    %c0_i32 = arith.constant 0 : i32
    %c0_i32_0 = arith.constant 0 : i32
    return %arg0, %c0_i32 : i32, i32
  }
}

</mosaic_0001>

<llo_original>
// kernel: tpu_custom_call.1
$region0: #{tpu_custom_call.1}
  #allocation0 [shape = 'u32[]', space=smem, size = 0x4, offset = 0x4, fixed_abs, tag = 'smem constant byte address 0x4 - core index']
  #allocation1 [shape = 'u32[144,128]{1,0:T(1,128)}', space=vmem, size = 0x12000, scoped, tag = 'internal scratch']
  %s0 = inlined_call_operand.hbm [shape: f32[64,128], index: 0, kind: input, shape index: {}]
  %s1 = inlined_call_operand.hbm [shape: bf16[128,128], index: 1, kind: input, shape index: {}]
  %s2 = inlined_call_operand.vmem [shape: f32[1,128], index: 2, kind: input, shape index: {}]
  %s3 = inlined_call_operand.hbm [shape: bf16[128,128], index: 3, kind: input, shape index: {}]
  %s4 = inlined_call_operand.vmem [shape: f32[1,128], index: 4, kind: input, shape index: {}]
  %s5 = inlined_call_operand.hbm [shape: f32[64,128], index: 5, kind: output, shape index: {}]
  %s6 = sld [smem:[#allocation0]]
  $region42: #{tpu_custom_call.1} parent=0
    _
  %s8 = ssub.s32 1, %s6
  %s9 = scalar_select 0, %s8, %s6
  $region1: #{tpu_custom_call.1} parent=0
    #allocation2 [shape = 'u8[32768]{0}', space=vmem, size = 0x8000, scoped, tag = 'input window, operand 0, single buffered']
    #allocation3 [shape = 's32[1]{0}', space=sflag, size = 0x4, scoped, tag = 'scoped memory for tpu_custom_call.1']
    #allocation4 [shape = 's32[1]{0}', space=sflag, size = 0x4, scoped, tag = 'scoped memory for tpu_custom_call.1']
    #allocation5 [shape = 'u8[32768]{0}', space=vmem, size = 0x8000, scoped, tag = 'input window, operand 1, single buffered']
    #allocation6 [shape = 's32[1]{0}', space=sflag, size = 0x4, scoped, tag = 'scoped memory for tpu_custom_call.1']
    #allocation7 [shape = 'u8[32768]{0}', space=vmem, size = 0x8000, scoped, tag = 'input window, operand 3, single buffered']
    #allocation8 [shape = 'u8[32768]{0}', space=vmem, size = 0x8000, scoped, tag = 'output window, operand 0, single buffered']
    %10 = vsyncpa [#allocation3], 0
    %11 = vsyncpa [#allocation6], 0
    %12 = vsyncpa [#allocation4], 0
    // Predicated region
    $region2: #{tpu_custom_call.1} parent=1 // pred_check
      _
    $region3: #{tpu_custom_call.1} parent=1 // pred_check_branch
      %14 = sbr.rel (0) target = $region5
    $region4: #{tpu_custom_call.1} parent=1 // pred_region
      %s16 = ssub.s32 1024, 1024
      %17 = vsyncadd [#allocation3], %s16
      %s18 = sshll.u32 [#allocation2], 4
      %s19 = int_to_ptr.vmem [resolvable:$true] %s18
      %24 = dma.hbm_to_vmem [thread:$0]  %s0, 1024, %s19, [#allocation3], 128, 128, 8
    $region5: #{tpu_custom_call.1} parent=1 // pred_fallthru
      _
    // Predicated region
    $region6: #{tpu_custom_call.1} parent=1 // pred_check
      _
    $region7: #{tpu_custom_call.1} parent=1 // pred_check_branch
      %26 = sbr.rel (0) target = $region9
    $region8: #{tpu_custom_call.1} parent=1 // pred_region
      %s28 = ssub.s32 1024, 1024
      %29 = vsyncadd [#allocation6], %s28
      %s30 = sshll.u32 [#allocation5], 4
      %s31 = int_to_ptr.vmem [resolvable:$true] %s30
      %36 = dma.hbm_to_vmem [thread:$0]  %s1, 1024, %s31, [#allocation6], 64, 64, 4
    $region9: #{tpu_custom_call.1} parent=1 // pred_fallthru
      _
    // Predicated region
    $region10: #{tpu_custom_call.1} parent=1 // pred_check
      _
    $region11: #{tpu_custom_call.1} parent=1 // pred_check_branch
      %38 = sbr.rel (0) target = $region13
    $region12: #{tpu_custom_call.1} parent=1 // pred_region
      _
    $region13: #{tpu_custom_call.1} parent=1 // pred_fallthru
      _
    // Predicated region
    $region14: #{tpu_custom_call.1} parent=1 // pred_check
      _
    $region15: #{tpu_custom_call.1} parent=1 // pred_check_branch
      %40 = sbr.rel (0) target = $region17
    $region16: #{tpu_custom_call.1} parent=1 // pred_region
      %s42 = ssub.s32 1024, 1024
      %43 = vsyncadd [#allocation6], %s42
      %s44 = sshll.u32 [#allocation7], 4
      %s45 = int_to_ptr.vmem [resolvable:$true] %s44
      %50 = dma.hbm_to_vmem [thread:$0]  %s3, 1024, %s45, [#allocation6], 64, 64, 4
    $region17: #{tpu_custom_call.1} parent=1 // pred_fallthru
      _
    // Predicated region
    $region18: #{tpu_custom_call.1} parent=1 // pred_check
      _
    $region19: #{tpu_custom_call.1} parent=1 // pred_check_branch
      %52 = sbr.rel (0) target = $region21
    $region20: #{tpu_custom_call.1} parent=1 // pred_region
      _
    $region21: #{tpu_custom_call.1} parent=1 // pred_fallthru
      _
    // Predicated region
    $region22: #{tpu_custom_call.1} parent=1 // pred_check
      _
    $region23: #{tpu_custom_call.1} parent=1 // pred_check_branch
      %54 = sbr.rel (0) target = $region25
    $region24: #{tpu_custom_call.1} parent=1 // pred_region
      %55 = dma.done [#allocation3], 1024
    $region25: #{tpu_custom_call.1} parent=1 // pred_fallthru
      _
    // Predicated region
    $region26: #{tpu_custom_call.1} parent=1 // pred_check
      _
    $region27: #{tpu_custom_call.1} parent=1 // pred_check_branch
      %57 = sbr.rel (0) target = $region29
    $region28: #{tpu_custom_call.1} parent=1 // pred_region
      %58 = dma.done [#allocation6], 1024
    $region29: #{tpu_custom_call.1} parent=1 // pred_fallthru
      _
    // Predicated region
    $region30: #{tpu_custom_call.1} parent=1 // pred_check
      _
    $region31: #{tpu_custom_call.1} parent=1 // pred_check_branch
      %60 = sbr.rel (0) target = $region33
    $region32: #{tpu_custom_call.1} parent=1 // pred_region
      %61 = dma.done [#allocation6], 1024
    $region33: #{tpu_custom_call.1} parent=1 // pred_fallthru
      _
    %v63 = vld [vmem:[#allocation2] sm:$0xff]
    %v64 = vld [vmem:[#allocation2 + $0x8] sm:$0xff]
    %v65 = vld [vmem:[#allocation2 + $0x10] sm:$0xff]
    %v66 = vld [vmem:[#allocation2 + $0x18] sm:$0xff]
    %v67 = vld [vmem:[#allocation2 + $0x20] sm:$0xff]
    %v68 = vld [vmem:[#allocation2 + $0x28] sm:$0xff]
    %v69 = vld [vmem:[#allocation2 + $0x30] sm:$0xff]
    %v70 = vld [vmem:[#allocation2 + $0x38] sm:$0xff]
    %v71 = vpack.c.bf16 %v64, %v63
    %v72 = vpack.c.bf16 %v66, %v65
    %v73 = vpack.c.bf16 %v68, %v67
    %v74 = vpack.c.bf16 %v70, %v69
    %v75 = vld [vmem:[#allocation5] sm:$0xf]
    %v76 = vld [vmem:[#allocation5 + $0x4] sm:$0xf]
    %v77 = vld [vmem:[#allocation5 + $0x8] sm:$0xf]
    %v78 = vld [vmem:[#allocation5 + $0xc] sm:$0xf]
    %v79 = vld [vmem:[#allocation5 + $0x10] sm:$0xf]
    %v80 = vld [vmem:[#allocation5 + $0x14] sm:$0xf]
    %v81 = vld [vmem:[#allocation5 + $0x18] sm:$0xf]
    %v82 = vld [vmem:[#allocation5 + $0x1c] sm:$0xf]
    %v83 = vld [vmem:[#allocation5 + $0x20] sm:$0xf]
    %v84 = vld [vmem:[#allocation5 + $0x24] sm:$0xf]
    %v85 = vld [vmem:[#allocation5 + $0x28] sm:$0xf]
    %v86 = vld [vmem:[#allocation5 + $0x2c] sm:$0xf]
    %v87 = vld [vmem:[#allocation5 + $0x30] sm:$0xf]
    %v88 = vld [vmem:[#allocation5 + $0x34] sm:$0xf]
    %v89 = vld [vmem:[#allocation5 + $0x38] sm:$0xf]
    %v90 = vld [vmem:[#allocation5 + $0x3c] sm:$0xf]
    %v91 = vld [vmem:[%s2] sm:$0x1]
    %v93 = vlaneseq
    %v94 = vshrl.u32 %v93, 7
    %v95 = vsub.s32 0, %v94
    %v96 = vrot.slane %v91, %v95
    %v114 = vunpack.c.l.b16 %v75
    %v115 = vunpack.c.l.b16 %v76
    %v116 = vunpack.c.l.b16 %v77
    %v117 = vunpack.c.l.b16 %v78
    %v118 = vunpack.c.l.b16 %v79
    %v119 = vunpack.c.l.b16 %v80
    %v120 = vunpack.c.l.b16 %v81
    %v121 = vunpack.c.l.b16 %v82
    %v122 = vunpack.c.l.b16 %v83
    %v123 = vunpack.c.l.b16 %v84
    %v124 = vunpack.c.l.b16 %v85
    %v125 = vunpack.c.l.b16 %v86
    %v126 = vunpack.c.l.b16 %v87
    %v127 = vunpack.c.l.b16 %v88
    %v128 = vunpack.c.l.b16 %v89
    %v129 = vunpack.c.l.b16 %v90
    %v130 = vpack.c.b16 %v115, %v114
    %v131 = vpack.c.b16 %v117, %v116
    %v132 = vpack.c.b16 %v119, %v118
    %v133 = vpack.c.b16 %v121, %v120
    %v134 = vpack.c.b16 %v123, %v122
    %v135 = vpack.c.b16 %v125, %v124
    %v136 = vpack.c.b16 %v127, %v126
    %v137 = vpack.c.b16 %v129, %v128
    %146 = vmatprep.subr.bf16.mxu0 0
    %147 = vmatpush1.bf16.msra.mxu0 %v137
    %148 = vmatprep.subr.bf16.mxu0 0
    %149 = vmatpush1.bf16.msra.mxu0 %v136
    %150 = vmatprep.subr.bf16.mxu0 0
    %151 = vmatpush1.bf16.msra.mxu0 %v135
    %152 = vmatprep.subr.bf16.mxu0 0
    %153 = vmatpush1.bf16.msra.mxu0 %v134
    %154 = vmatprep.subr.bf16.mxu0 0
    %155 = vmatpush1.bf16.msra.mxu0 %v133
    %156 = vmatprep.subr.bf16.mxu0 0
    %157 = vmatpush1.bf16.msra.mxu0 %v132
    %158 = vmatprep.subr.bf16.mxu0 0
    %159 = vmatpush1.bf16.msra.mxu0 %v131
    %160 = vmatprep.subr.bf16.mxu0 0
    %161 = vmatpush1.bf16.msra.mxu0 %v130
    %162 = vmatprep.subr.bf16.mxu0 0
    %163 = vmatpush2.bf16.msra.mxu0 0
    %164 = vmatprep.subr.bf16.mxu0 0
    %165 = vmatpush2.bf16.msra.mxu0 0
    %166 = vmatprep.subr.bf16.mxu0 0
    %167 = vmatpush2.bf16.msra.mxu0 0
    %168 = vmatprep.subr.bf16.mxu0 0
    %169 = vmatpush2.bf16.msra.mxu0 0
    %170 = vmatprep.subr.bf16.mxu0 0
    %171 = vmatpush2.bf16.msra.mxu0 0
    %172 = vmatprep.subr.bf16.mxu0 0
    %173 = vmatpush2.bf16.msra.mxu0 0
    %174 = vmatprep.subr.bf16.mxu0 0
    %175 = vmatpush2.bf16.msra.mxu0 0
    %176 = vmatprep.subr.bf16.mxu0 0
    %177 = vmatpush2.bf16.msra.mxu0 0
    %178 = vmatprep.mubr.bf16.mxu0 0
    %179 = vmatmul.mubr.bf16.gmra.mxu0 %v71
    %v180 = vpop.f32.mrf.mxu0
    %v181 = vadd.f32 %v96, %v180
    %v182 = vpop.f32.mrf.mxu0
    %v183 = vpop.f32.mrf.mxu0
    %v184 = vadd.f32 %v96, %v183
    %v185 = vpop.f32.mrf.mxu0
    %186 = vmatprep.mubr.bf16.mxu0 0
    %187 = vmatmul.mubr.bf16.gmra.mxu0 %v72
    %v188 = vpop.f32.mrf.mxu0
    %v189 = vadd.f32 %v96, %v188
    %v190 = vpop.f32.mrf.mxu0
    %v191 = vpop.f32.mrf.mxu0
    %v192 = vadd.f32 %v96, %v191
    %v193 = vpop.f32.mrf.mxu0
    %194 = vmatprep.mubr.bf16.mxu0 0
    %195 = vmatmul.mubr.bf16.gmra.mxu0 %v73
    %v196 = vpop.f32.mrf.mxu0
    %v197 = vadd.f32 %v96, %v196
    %v198 = vpop.f32.mrf.mxu0
    %v199 = vpop.f32.mrf.mxu0
    %v200 = vadd.f32 %v96, %v199
    %v201 = vpop.f32.mrf.mxu0
    %202 = vmatprep.mubr.bf16.mxu0 0
    %203 = vmatmul.mubr.bf16.gmra.mxu0 %v74
    %v204 = vpop.f32.mrf.mxu0
    %v205 = vadd.f32 %v96, %v204
    %v206 = vpop.f32.mrf.mxu0
    %v207 = vpop.f32.mrf.mxu0
    %v208 = vadd.f32 %v96, %v207
    %v209 = vpop.f32.mrf.mxu0
    %210 = vdwg.mxu0
    %v211 = vmax.f32 %v181, 0.0
    %v212 = vmax.f32 %v184, 0.0
    %v213 = vmax.f32 %v189, 0.0
    %v214 = vmax.f32 %v192, 0.0
    %v215 = vmax.f32 %v197, 0.0
    %v216 = vmax.f32 %v200, 0.0
    %v217 = vmax.f32 %v205, 0.0
    %v218 = vmax.f32 %v208, 0.0
    %v219 = vpack.c.bf16 %v212, %v211
    %v220 = vpack.c.bf16 %v214, %v213
    %v221 = vpack.c.bf16 %v216, %v215
    %v222 = vpack.c.bf16 %v218, %v217
    %v223 = vld [vmem:[#allocation7] sm:$0xf]
    %v224 = vld [vmem:[#allocation7 + $0x4] sm:$0xf]
    %v225 = vld [vmem:[#allocation7 + $0x8] sm:$0xf]
    %v226 = vld [vmem:[#allocation7 + $0xc] sm:$0xf]
    %v227 = vld [vmem:[#allocation7 + $0x10] sm:$0xf]
    %v228 = vld [vmem:[#allocation7 + $0x14] sm:$0xf]
    %v229 = vld [vmem:[#allocation7 + $0x18] sm:$0xf]
    %v230 = vld [vmem:[#allocation7 + $0x1c] sm:$0xf]
    %v231 = vld [vmem:[#allocation7 + $0x20] sm:$0xf]
    %v232 = vld [vmem:[#allocation7 + $0x24] sm:$0xf]
    %v233 = vld [vmem:[#allocation7 + $0x28] sm:$0xf]
    %v234 = vld [vmem:[#allocation7 + $0x2c] sm:$0xf]
    %v235 = vld [vmem:[#allocation7 + $0x30] sm:$0xf]
    %v236 = vld [vmem:[#allocation7 + $0x34] sm:$0xf]
    %v237 = vld [vmem:[#allocation7 + $0x38] sm:$0xf]
    %v238 = vld [vmem:[#allocation7 + $0x3c] sm:$0xf]
    %v239 = vld [vmem:[%s4] sm:$0x1]
    %v241 = vlaneseq
    %v242 = vshrl.u32 %v241, 7
    %v243 = vsub.s32 0, %v242
    %v244 = vrot.slane %v239, %v243
    %v262 = vunpack.c.l.b16 %v223
    %v263 = vunpack.c.l.b16 %v224
    %v264 = vunpack.c.l.b16 %v225
    %v265 = vunpack.c.l.b16 %v226
    %v266 = vunpack.c.l.b16 %v227
    %v267 = vunpack.c.l.b16 %v228
    %v268 = vunpack.c.l.b16 %v229
    %v269 = vunpack.c.l.b16 %v230
    %v270 = vunpack.c.l.b16 %v231
    %v271 = vunpack.c.l.b16 %v232
    %v272 = vunpack.c.l.b16 %v233
    %v273 = vunpack.c.l.b16 %v234
    %v274 = vunpack.c.l.b16 %v235
    %v275 = vunpack.c.l.b16 %v236
    %v276 = vunpack.c.l.b16 %v237
    %v277 = vunpack.c.l.b16 %v238
    %v278 = vpack.c.b16 %v263, %v262
    %v279 = vpack.c.b16 %v265, %v264
    %v280 = vpack.c.b16 %v267, %v266
    %v281 = vpack.c.b16 %v269, %v268
    %v282 = vpack.c.b16 %v271, %v270
    %v283 = vpack.c.b16 %v273, %v272
    %v284 = vpack.c.b16 %v275, %v274
    %v285 = vpack.c.b16 %v277, %v276
    %294 = vmatprep.subr.bf16.mxu0 0
    %295 = vmatpush1.bf16.msra.mxu0 %v285
    %296 = vmatprep.subr.bf16.mxu0 0
    %297 = vmatpush1.bf16.msra.mxu0 %v284
    %298 = vmatprep.subr.bf16.mxu0 0
    %299 = vmatpush1.bf16.msra.mxu0 %v283
    %300 = vmatprep.subr.bf16.mxu0 0
    %301 = vmatpush1.bf16.msra.mxu0 %v282
    %302 = vmatprep.subr.bf16.mxu0 0
    %303 = vmatpush1.bf16.msra.mxu0 %v281
    %304 = vmatprep.subr.bf16.mxu0 0
    %305 = vmatpush1.bf16.msra.mxu0 %v280
    %306 = vmatprep.subr.bf16.mxu0 0
    %307 = vmatpush1.bf16.msra.mxu0 %v279
    %308 = vmatprep.subr.bf16.mxu0 0
    %309 = vmatpush1.bf16.msra.mxu0 %v278
    %310 = vmatprep.subr.bf16.mxu0 0
    %311 = vmatpush2.bf16.msra.mxu0 0
    %312 = vmatprep.subr.bf16.mxu0 0
    %313 = vmatpush2.bf16.msra.mxu0 0
    %314 = vmatprep.subr.bf16.mxu0 0
    %315 = vmatpush2.bf16.msra.mxu0 0
    %316 = vmatprep.subr.bf16.mxu0 0
    %317 = vmatpush2.bf16.msra.mxu0 0
    %318 = vmatprep.subr.bf16.mxu0 0
    %319 = vmatpush2.bf16.msra.mxu0 0
    %320 = vmatprep.subr.bf16.mxu0 0
    %321 = vmatpush2.bf16.msra.mxu0 0
    %322 = vmatprep.subr.bf16.mxu0 0
    %323 = vmatpush2.bf16.msra.mxu0 0
    %324 = vmatprep.subr.bf16.mxu0 0
    %325 = vmatpush2.bf16.msra.mxu0 0
    %326 = vmatprep.mubr.bf16.mxu0 0
    %327 = vmatmul.mubr.bf16.gmra.mxu0 %v219
    %v328 = vpop.f32.mrf.mxu0
    %v329 = vadd.f32 %v244, %v328
    %v330 = vpop.f32.mrf.mxu0
    %v331 = vpop.f32.mrf.mxu0
    %v332 = vadd.f32 %v244, %v331
    %v333 = vpop.f32.mrf.mxu0
    %334 = vmatprep.mubr.bf16.mxu0 0
    %335 = vmatmul.mubr.bf16.gmra.mxu0 %v220
    %v336 = vpop.f32.mrf.mxu0
    %v337 = vadd.f32 %v244, %v336
    %v338 = vpop.f32.mrf.mxu0
    %v339 = vpop.f32.mrf.mxu0
    %v340 = vadd.f32 %v244, %v339
    %v341 = vpop.f32.mrf.mxu0
    %342 = vmatprep.mubr.bf16.mxu0 0
    %343 = vmatmul.mubr.bf16.gmra.mxu0 %v221
    %v344 = vpop.f32.mrf.mxu0
    %v345 = vadd.f32 %v244, %v344
    %v346 = vpop.f32.mrf.mxu0
    %v347 = vpop.f32.mrf.mxu0
    %v348 = vadd.f32 %v244, %v347
    %v349 = vpop.f32.mrf.mxu0
    %350 = vmatprep.mubr.bf16.mxu0 0
    %351 = vmatmul.mubr.bf16.gmra.mxu0 %v222
    %v352 = vpop.f32.mrf.mxu0
    %v353 = vadd.f32 %v244, %v352
    %v354 = vpop.f32.mrf.mxu0
    %v355 = vpop.f32.mrf.mxu0
    %v356 = vadd.f32 %v244, %v355
    %v357 = vpop.f32.mrf.mxu0
    %358 = vdwg.mxu0
    %359 = vst [vmem:[#allocation8] sm:$0xff] %v329
    %360 = vst [vmem:[#allocation8 + $0x8] sm:$0xff] %v332
    %361 = vst [vmem:[#allocation8 + $0x10] sm:$0xff] %v337
    %362 = vst [vmem:[#allocation8 + $0x18] sm:$0xff] %v340
    %363 = vst [vmem:[#allocation8 + $0x20] sm:$0xff] %v345
    %364 = vst [vmem:[#allocation8 + $0x28] sm:$0xff] %v348
    %365 = vst [vmem:[#allocation8 + $0x30] sm:$0xff] %v353
    %366 = vst [vmem:[#allocation8 + $0x38] sm:$0xff] %v356
    // Predicated region
    $region34: #{tpu_custom_call.1} parent=1 // pred_check
      _
    $region35: #{tpu_custom_call.1} parent=1 // pred_check_branch
      %368 = sbr.rel (0) target = $region37
    $region36: #{tpu_custom_call.1} parent=1 // pred_region
      %s370 = ssub.s32 1024, 1024
      %371 = vsyncadd [#allocation4], %s370
      %s372 = sshll.u32 [#allocation8], 4
      %s373 = int_to_ptr.vmem [resolvable:$true] %s372
      %378 = dma.vmem_to_hbm [thread:$0]  %s373, 1024, %s5, [#allocation4], 128, 128, 8
    $region37: #{tpu_custom_call.1} parent=1 // pred_fallthru
      _
    // Predicated region
    $region38: #{tpu_custom_call.1} parent=1 // pred_check
      _
    $region39: #{tpu_custom_call.1} parent=1 // pred_check_branch
      %380 = sbr.rel (0) target = $region41
    $region40: #{tpu_custom_call.1} parent=1 // pred_region
      %381 = dma.done [#allocation4], 1024
    $region41: #{tpu_custom_call.1} parent=1 // pred_fallthru
      _
    %382 = vsyncpa [#allocation3], 1
    %383 = vsyncpa [#allocation6], 1
    %384 = vsyncpa [#allocation4], 1

</llo_original>
